<compile_context>
chip_gen: v7x
topology: tpu7x:2x2x1
jax: 0.10.0
libtpu: 0.0.40
codegen_flags: <defaults>
</compile_context>

<pallas_src>
import functools

import jax
import jax.numpy as jnp
from jax.experimental import pallas as pl
from jax.experimental.pallas import tpu as pltpu


def _round_up(n, m):
    return ((n + m - 1) // m) * m


def duelling_q_kernel(x_ref, w1_ref, b1_ref, w2_ref, b2_ref, wh_ref, bh_ref,
                      out_ref, *, mxu_dtype):
    """One batch tile: fc1+relu, fc2+relu, fused heads, duelling combine."""
    cast = lambda t: t.astype(mxu_dtype)

    x = cast(x_ref[...])                                              # (TB, S)

    # fc1 + relu  (bias add / relu in f32)
    h1 = jnp.dot(x, cast(w1_ref[...]),
                 preferred_element_type=jnp.float32) + b1_ref[...]    # (TB, 64)
    h1 = jnp.maximum(h1, 0.0)

    # fc2 + relu
    h2 = jnp.dot(cast(h1), cast(w2_ref[...]),
                 preferred_element_type=jnp.float32) + b2_ref[...]    # (TB, 16)
    h2 = jnp.maximum(h2, 0.0)

    # fused advantage+value head: columns [0, A) are adv, column A is value
    head = jnp.dot(cast(h2), cast(wh_ref[...]),
                   preferred_element_type=jnp.float32) + bh_ref[...]  # (TB, A+1)

    A = out_ref.shape[1]
    a = head[:, :A]                                                   # (TB, A)
    v = head[:, A:A + 1]                                              # (TB, 1)

    a_mean = jnp.mean(a, axis=1, keepdims=True)                       # (TB, 1)
    out_ref[...] = (v + a - a_mean).astype(out_ref.dtype)


def duelling_q_forward(x, params, *, tile_b=256, mxu_dtype=jnp.float32):
    """x: (B, state_size) float32.  params: dict of weights/biases.

    Returns (B, action_size) float32 Q-values.
    """
    w1, b1, w2, b2 = params["w1"], params["b1"], params["w2"], params["b2"]
    wa, ba, wv, bv = params["wa"], params["ba"], params["wv"], params["bv"]

    # Merge the two heads into a single (16, A+1) matmul.
    wh = jnp.concatenate([wa, wv], axis=1)     # (16, A+1)
    bh = jnp.concatenate([ba, bv], axis=1)     # (1,  A+1)

    B, S = x.shape
    A = wa.shape[1]

    # Batch tiling: TB is a multiple of 8 (f32 sublane) and <= padded batch.
    TB = min(tile_b, _round_up(B, 8))
    B_pad = _round_up(B, TB)
    if B_pad != B:
        x = jnp.pad(x, ((0, B_pad - B), (0, 0)))   # zero rows; sliced off below
    grid = (B_pad // TB,)

    # Weights/biases: full-array blocks with a constant index_map -> resident
    # in VMEM across all grid steps (no re-DMA per tile).
    resident = lambda arr: pl.BlockSpec(arr.shape, lambda i: (0,) * arr.ndim)

    out_pad = pl.pallas_call(
        functools.partial(duelling_q_kernel, mxu_dtype=mxu_dtype),
        out_shape=jax.ShapeDtypeStruct((B_pad, A), jnp.float32),
        grid_spec=pltpu.PrefetchScalarGridSpec(
            num_scalar_prefetch=0,
            grid=grid,
            in_specs=[
                pl.BlockSpec((TB, S), lambda i: (i, 0)),   # x: tiled over batch
                resident(w1), resident(b1),
                resident(w2), resident(b2),
                resident(wh), resident(bh),
            ],
            out_specs=pl.BlockSpec((TB, A), lambda i: (i, 0)),
        ),
        compiler_params=pltpu.CompilerParams(
            dimension_semantics=("parallel",),        # megacore on v7x
            vmem_limit_bytes=4 * 1024 * 1024,         # right-sized; footprint ~100s KiB
        ),
    )(x, w1, b1, w2, b2, wh, bh)

    return out_pad[:B]


def init_params(key, state_size, action_size):
    """Deterministic init mimicking torch.nn.Linear default (U[-1/sqrt(fan_in), +])."""
    ks = jax.random.split(key, 8)

    def linear(kw, kb, fan_in, fan_out):
        bound = 1.0 / jnp.sqrt(fan_in)
        w = jax.random.uniform(kw, (fan_in, fan_out), jnp.float32, -bound, bound)
        b = jax.random.uniform(kb, (1, fan_out), jnp.float32, -bound, bound)
        return w, b

    w1, b1 = linear(ks[0], ks[1], state_size, 64)
    w2, b2 = linear(ks[2], ks[3], 64, 16)
    wa, ba = linear(ks[4], ks[5], 16, action_size)
    wv, bv = linear(ks[6], ks[7], 16, 1)
    return dict(w1=w1, b1=b1, w2=w2, b2=b2, wa=wa, ba=ba, wv=wv, bv=bv)


def reference_forward(x, p):
    """Pure-JAX reference for correctness check."""
    h = jnp.maximum(x @ p["w1"] + p["b1"], 0.0)
    h = jnp.maximum(h @ p["w2"] + p["b2"], 0.0)
    a = h @ p["wa"] + p["ba"]
    v = h @ p["wv"] + p["bv"]
    return v + a - jnp.mean(a, axis=1, keepdims=True)


if __name__ == "__main__":
    key = jax.random.PRNGKey(0)
    state_size, action_size, batch = 37, 4, 8   # Banana-navigation sizes, small batch

    k_params, k_x = jax.random.split(key)
    params = init_params(k_params, state_size, action_size)
    x = jax.random.normal(k_x, (batch, state_size), jnp.float32)

    out = duelling_q_forward(x, params)         # f32 MXU path (matches reference)
    out = jax.block_until_ready(out)

    ref = reference_forward(x, params)
    assert out.shape == (batch, action_size)
    assert jnp.allclose(out, ref, atol=1e-5, rtol=1e-5), "mismatch vs reference"

    # Also exercise the batch-tiled path (multiple grid steps, padded tail).
    xb = jax.random.normal(jax.random.PRNGKey(1), (1000, state_size), jnp.float32)
    outb = jax.block_until_ready(duelling_q_forward(xb, params, tile_b=256))
    assert outb.shape == (1000, action_size)
    assert jnp.allclose(outb, reference_forward(xb, params), atol=1e-5, rtol=1e-5)

    print("KERNEL_OK")
</pallas_src>

<mosaic_0001>
module attributes {stable_mosaic.version = 11 : i64} {
  func.func @duelling_q_kernel(%arg0: i32, %arg1: memref<8x37xf32, #tpu.memory_space<vmem>>, %arg2: memref<37x64xf32, #tpu.memory_space<vmem>>, %arg3: memref<1x64xf32, #tpu.memory_space<vmem>>, %arg4: memref<64x16xf32, #tpu.memory_space<vmem>>, %arg5: memref<1x16xf32, #tpu.memory_space<vmem>>, %arg6: memref<16x5xf32, #tpu.memory_space<vmem>>, %arg7: memref<1x5xf32, #tpu.memory_space<vmem>>, %arg8: memref<8x4xf32, #tpu.memory_space<vmem>>) attributes {dimension_semantics = [#tpu.dimension_semantics<parallel>], iteration_bounds = array<i64: 1>, scalar_prefetch = 0 : i64, scratch_operands = 0 : i64, tpu.core_type = #tpu.core_type<tc>, window_params = [{transform_indices = @transform_0, window_bounds = array<i64: 8, 37>}, {pipeline_mode = #tpu.pipeline_mode<synchronous>, transform_indices = @transform_1, window_bounds = array<i64: 37, 64>}, {pipeline_mode = #tpu.pipeline_mode<synchronous>, transform_indices = @transform_2, window_bounds = array<i64: 1, 64>}, {pipeline_mode = #tpu.pipeline_mode<synchronous>, transform_indices = @transform_3, window_bounds = array<i64: 64, 16>}, {pipeline_mode = #tpu.pipeline_mode<synchronous>, transform_indices = @transform_4, window_bounds = array<i64: 1, 16>}, {pipeline_mode = #tpu.pipeline_mode<synchronous>, transform_indices = @transform_5, window_bounds = array<i64: 16, 5>}, {pipeline_mode = #tpu.pipeline_mode<synchronous>, transform_indices = @transform_6, window_bounds = array<i64: 1, 5>}, {transform_indices = @transform_7, window_bounds = array<i64: 8, 4>}]} {
    %c0 = arith.constant 0 : index
    %c0_0 = arith.constant 0 : index
    %0 = vector.load %arg1[%c0, %c0_0] : memref<8x37xf32, #tpu.memory_space<vmem>>, vector<8x37xf32>
    %c0_1 = arith.constant 0 : index
    %c0_2 = arith.constant 0 : index
    %1 = vector.load %arg2[%c0_1, %c0_2] : memref<37x64xf32, #tpu.memory_space<vmem>>, vector<37x64xf32>
    %cst = arith.constant dense<0.000000e+00> : vector<8x64xf32>
    %2 = tpu.matmul %0, %1, %cst {dimension_numbers = #tpu.dot_dimension_numbers<[1], [0], [0], [1], [0, 0, 1, 1], [], []>} : vector<8x37xf32>, vector<37x64xf32>, vector<8x64xf32> -> vector<8x64xf32>
    %c0_3 = arith.constant 0 : index
    %c0_4 = arith.constant 0 : index
    %3 = vector.load %arg3[%c0_3, %c0_4] : memref<1x64xf32, #tpu.memory_space<vmem>>, vector<1x64xf32>
    %4 = vector.broadcast %3 : vector<1x64xf32> to vector<8x64xf32>
    %5 = arith.addf %2, %4 : vector<8x64xf32>
    %cst_5 = arith.constant 0.000000e+00 : f32
    %6 = vector.broadcast %cst_5 : f32 to vector<8x64xf32>
    %7 = arith.maximumf %5, %6 : vector<8x64xf32>
    %c0_6 = arith.constant 0 : index
    %c0_7 = arith.constant 0 : index
    %8 = vector.load %arg4[%c0_6, %c0_7] : memref<64x16xf32, #tpu.memory_space<vmem>>, vector<64x16xf32>
    %cst_8 = arith.constant dense<0.000000e+00> : vector<8x16xf32>
    %9 = tpu.matmul %7, %8, %cst_8 {dimension_numbers = #tpu.dot_dimension_numbers<[1], [0], [0], [1], [0, 0, 1, 1], [], []>} : vector<8x64xf32>, vector<64x16xf32>, vector<8x16xf32> -> vector<8x16xf32>
    %c0_9 = arith.constant 0 : index
    %c0_10 = arith.constant 0 : index
    %10 = vector.load %arg5[%c0_9, %c0_10] : memref<1x16xf32, #tpu.memory_space<vmem>>, vector<1x16xf32>
    %11 = vector.broadcast %10 : vector<1x16xf32> to vector<8x16xf32>
    %12 = arith.addf %9, %11 : vector<8x16xf32>
    %cst_11 = arith.constant 0.000000e+00 : f32
    %13 = vector.broadcast %cst_11 : f32 to vector<8x16xf32>
    %14 = arith.maximumf %12, %13 : vector<8x16xf32>
    %c0_12 = arith.constant 0 : index
    %c0_13 = arith.constant 0 : index
    %15 = vector.load %arg6[%c0_12, %c0_13] : memref<16x5xf32, #tpu.memory_space<vmem>>, vector<16x5xf32>
    %cst_14 = arith.constant dense<0.000000e+00> : vector<8x5xf32>
    %16 = tpu.matmul %14, %15, %cst_14 {dimension_numbers = #tpu.dot_dimension_numbers<[1], [0], [0], [1], [0, 0, 1, 1], [], []>} : vector<8x16xf32>, vector<16x5xf32>, vector<8x5xf32> -> vector<8x5xf32>
    %c0_15 = arith.constant 0 : index
    %c0_16 = arith.constant 0 : index
    %17 = vector.load %arg7[%c0_15, %c0_16] : memref<1x5xf32, #tpu.memory_space<vmem>>, vector<1x5xf32>
    %18 = vector.broadcast %17 : vector<1x5xf32> to vector<8x5xf32>
    %19 = arith.addf %16, %18 : vector<8x5xf32>
    %20 = vector.extract_strided_slice %19 {offsets = [0, 0], sizes = [8, 4], strides = [1, 1]} : vector<8x5xf32> to vector<8x4xf32>
    %21 = vector.extract_strided_slice %19 {offsets = [0, 4], sizes = [8, 1], strides = [1, 1]} : vector<8x5xf32> to vector<8x1xf32>
    %cst_17 = arith.constant dense<0.000000e+00> : vector<8xf32>
    %22 = vector.multi_reduction <add>, %20, %cst_17 [1] : vector<8x4xf32> to vector<8xf32>
    %23 = vector.shape_cast %22 : vector<8xf32> to vector<8x1xf32>
    %cst_18 = arith.constant 4.000000e+00 : f32
    %24 = vector.broadcast %cst_18 : f32 to vector<8x1xf32>
    %25 = arith.divf %23, %24 : vector<8x1xf32>
    %26 = vector.broadcast %21 : vector<8x1xf32> to vector<8x4xf32>
    %27 = arith.addf %26, %20 : vector<8x4xf32>
    %28 = vector.broadcast %25 : vector<8x1xf32> to vector<8x4xf32>
    %29 = arith.subf %27, %28 : vector<8x4xf32>
    %c0_19 = arith.constant 0 : index
    %c0_20 = arith.constant 0 : index
    %30 = vector.load %arg8[%c0_19, %c0_20] : memref<8x4xf32, #tpu.memory_space<vmem>>, vector<8x4xf32>
    tpu.vector_store %arg8[%c0_19, %c0_20], %29 {strides = array<i32>} : memref<8x4xf32, #tpu.memory_space<vmem>>, vector<8x4xf32>,
    return
  }
  func.func @transform_0(%arg0: i32) -> (i32, i32) {
    %c0_i32 = arith.constant 0 : i32
    %c0_i32_0 = arith.constant 0 : i32
    return %arg0, %c0_i32 : i32, i32
  }
  func.func @transform_1(%arg0: i32) -> (i32, i32) {
    %c0_i32 = arith.constant 0 : i32
    %c0_i32_0 = arith.constant 0 : i32
    %c0_i32_1 = arith.constant 0 : i32
    return %c0_i32, %c0_i32_0 : i32, i32
  }
  func.func @transform_2(%arg0: i32) -> (i32, i32) {
    %c0_i32 = arith.constant 0 : i32
    %c0_i32_0 = arith.constant 0 : i32
    %c0_i32_1 = arith.constant 0 : i32
    return %c0_i32, %c0_i32_0 : i32, i32
  }
  func.func @transform_3(%arg0: i32) -> (i32, i32) {
    %c0_i32 = arith.constant 0 : i32
    %c0_i32_0 = arith.constant 0 : i32
    %c0_i32_1 = arith.constant 0 : i32
    return %c0_i32, %c0_i32_0 : i32, i32
  }
  func.func @transform_4(%arg0: i32) -> (i32, i32) {
    %c0_i32 = arith.constant 0 : i32
    %c0_i32_0 = arith.constant 0 : i32
    %c0_i32_1 = arith.constant 0 : i32
    return %c0_i32, %c0_i32_0 : i32, i32
  }
  func.func @transform_5(%arg0: i32) -> (i32, i32) {
    %c0_i32 = arith.constant 0 : i32
    %c0_i32_0 = arith.constant 0 : i32
    %c0_i32_1 = arith.constant 0 : i32
    return %c0_i32, %c0_i32_0 : i32, i32
  }
  func.func @transform_6(%arg0: i32) -> (i32, i32) {
    %c0_i32 = arith.constant 0 : i32
    %c0_i32_0 = arith.constant 0 : i32
    %c0_i32_1 = arith.constant 0 : i32
    return %c0_i32, %c0_i32_0 : i32, i32
  }
  func.func @transform_7(%arg0: i32) -> (i32, i32) {
    %c0_i32 = arith.constant 0 : i32
    %c0_i32_0 = arith.constant 0 : i32
    return %arg0, %c0_i32 : i32, i32
  }
}

</mosaic_0001>

<llo_original>
// kernel: tpu_custom_call.1
$region0: #{tpu_custom_call.1}
  #allocation0 [shape = 'u32[]', space=smem, size = 0x4, offset = 0x4, fixed_abs, tag = 'smem constant byte address 0x4 - core index']
  #allocation1 [shape = 'u32[144,128]{1,0:T(1,128)}', space=vmem, size = 0x12000, scoped, tag = 'internal scratch']
  %s0 = inlined_call_operand.vmem [shape: f32[8,37], index: 0, kind: input, shape index: {}]
  %s1 = inlined_call_operand.vmem [shape: f32[37,64], index: 1, kind: input, shape index: {}]
  %s2 = inlined_call_operand.vmem [shape: f32[1,64], index: 2, kind: input, shape index: {}]
  %s3 = inlined_call_operand.vmem [shape: f32[64,16], index: 3, kind: input, shape index: {}]
  %s4 = inlined_call_operand.vmem [shape: f32[1,16], index: 4, kind: input, shape index: {}]
  %s5 = inlined_call_operand.vmem [shape: f32[16,5], index: 5, kind: input, shape index: {}]
  %s6 = inlined_call_operand.vmem [shape: f32[1,5], index: 6, kind: input, shape index: {}]
  %s7 = inlined_call_operand.vmem [shape: f32[8,4], index: 7, kind: output, shape index: {}]
  %s8 = sld [smem:[#allocation0]]
  $region38: #{tpu_custom_call.1} parent=0
    _
  %s10 = ssub.s32 1, %s8
  %s11 = scalar_select 0, %s10, %s8
  // Predicated region
  $region2: #{tpu_custom_call.1} parent=0 // pred_check
    _
  $region3: #{tpu_custom_call.1} parent=0 // pred_check_branch
    %13 = sbr.rel (0) target = $region5
  $region4: #{tpu_custom_call.1} parent=0 // pred_region
    _
  $region5: #{tpu_custom_call.1} parent=0 // pred_fallthru
    _
  // Predicated region
  $region6: #{tpu_custom_call.1} parent=0 // pred_check
    _
  $region7: #{tpu_custom_call.1} parent=0 // pred_check_branch
    %15 = sbr.rel (0) target = $region9
  $region8: #{tpu_custom_call.1} parent=0 // pred_region
    _
  $region9: #{tpu_custom_call.1} parent=0 // pred_fallthru
    _
  // Predicated region
  $region10: #{tpu_custom_call.1} parent=0 // pred_check
    _
  $region11: #{tpu_custom_call.1} parent=0 // pred_check_branch
    %17 = sbr.rel (0) target = $region13
  $region12: #{tpu_custom_call.1} parent=0 // pred_region
    _
  $region13: #{tpu_custom_call.1} parent=0 // pred_fallthru
    _
  // Predicated region
  $region14: #{tpu_custom_call.1} parent=0 // pred_check
    _
  $region15: #{tpu_custom_call.1} parent=0 // pred_check_branch
    %19 = sbr.rel (0) target = $region17
  $region16: #{tpu_custom_call.1} parent=0 // pred_region
    _
  $region17: #{tpu_custom_call.1} parent=0 // pred_fallthru
    _
  // Predicated region
  $region18: #{tpu_custom_call.1} parent=0 // pred_check
    _
  $region19: #{tpu_custom_call.1} parent=0 // pred_check_branch
    %21 = sbr.rel (0) target = $region21
  $region20: #{tpu_custom_call.1} parent=0 // pred_region
    _
  $region21: #{tpu_custom_call.1} parent=0 // pred_fallthru
    _
  // Predicated region
  $region22: #{tpu_custom_call.1} parent=0 // pred_check
    _
  $region23: #{tpu_custom_call.1} parent=0 // pred_check_branch
    %23 = sbr.rel (0) target = $region25
  $region24: #{tpu_custom_call.1} parent=0 // pred_region
    _
  $region25: #{tpu_custom_call.1} parent=0 // pred_fallthru
    _
  // Predicated region
  $region26: #{tpu_custom_call.1} parent=0 // pred_check
    _
  $region27: #{tpu_custom_call.1} parent=0 // pred_check_branch
    %25 = sbr.rel (0) target = $region29
  $region28: #{tpu_custom_call.1} parent=0 // pred_region
    _
  $region29: #{tpu_custom_call.1} parent=0 // pred_fallthru
    _
  %v26 = vld [vmem:[%s0] sm:$0xff]
  %v27 = vld [vmem:[%s1] sm:$0xff]
  %v28 = vld [vmem:[%s1 + $0x8] sm:$0xff]
  %v29 = vld [vmem:[%s1 + $0x10] sm:$0xff]
  %v30 = vld [vmem:[%s1 + $0x18] sm:$0xff]
  %v31 = vld [vmem:[%s1 + $0x20] sm:$0x1f]
  %v32 = vld [vmem:[%s2] sm:$0x1]
  %v34 = vlaneseq
  %v35 = vshrl.u32 %v34, 7
  %v36 = vsub.s32 0, %v35
  %v37 = vrot.slane %v32, %v36
  %vm39 = vcmask 302080
  %v41 = vsel %vm39, %v26, 0
  %vm43 = vcmask 1044480
  %v45 = vsel %vm43, %v31, 0
  %47 = vmatprep.subr.mxu0 0.0
  %48 = vmatpush1.msra.mxu0 %v27
  %49 = vmatprep.subr.mxu0 0.0
  %50 = vmatpush1.msra.mxu0 %v28
  %51 = vmatprep.subr.mxu0 0.0
  %52 = vmatpush1.msra.mxu0 %v29
  %53 = vmatprep.subr.mxu0 0.0
  %54 = vmatpush1.msra.mxu0 %v30
  %55 = vmatprep.subr.mxu0 0.0
  %56 = vmatpush1.msra.mxu0 %v45
  %57 = vmatprep.subr.mxu0 0.0
  %58 = vmatpush1.msra.mxu0 0.0
  %59 = vmatprep.subr.mxu0 0.0
  %60 = vmatpush1.msra.mxu0 0.0
  %61 = vmatprep.subr.mxu0 0.0
  %62 = vmatpush1.msra.mxu0 0.0
  %63 = vmatprep.subr.mxu0 0.0
  %64 = vmatpush1.msra.mxu0 0.0
  %65 = vmatprep.subr.mxu0 0.0
  %66 = vmatpush1.msra.mxu0 0.0
  %67 = vmatprep.subr.mxu0 0.0
  %68 = vmatpush1.msra.mxu0 0.0
  %69 = vmatprep.subr.mxu0 0.0
  %70 = vmatpush1.msra.mxu0 0.0
  %71 = vmatprep.subr.mxu0 0.0
  %72 = vmatpush1.msra.mxu0 0.0
  %73 = vmatprep.subr.mxu0 0.0
  %74 = vmatpush1.msra.mxu0 0.0
  %75 = vmatprep.subr.mxu0 0.0
  %76 = vmatpush1.msra.mxu0 0.0
  %77 = vmatprep.subr.mxu0 0.0
  %78 = vmatpush1.msra.mxu0 0.0
  %79 = vmatprep.subr.mxu0 0.0
  %80 = vmatpush1.msra.mxu0 0.0
  %81 = vmatprep.subr.mxu0 0.0
  %82 = vmatpush1.msra.mxu0 0.0
  %83 = vmatprep.subr.mxu0 0.0
  %84 = vmatpush1.msra.mxu0 0.0
  %85 = vmatprep.subr.mxu0 0.0
  %86 = vmatpush1.msra.mxu0 0.0
  %87 = vmatprep.subr.mxu0 0.0
  %88 = vmatpush1.msra.mxu0 0.0
  %89 = vmatprep.subr.mxu0 0.0
  %90 = vmatpush1.msra.mxu0 0.0
  %91 = vmatprep.subr.mxu0 0.0
  %92 = vmatpush1.msra.mxu0 0.0
  %93 = vmatprep.subr.mxu0 0.0
  %94 = vmatpush1.msra.mxu0 0.0
  %95 = vmatprep.subr.mxu0 0.0
  %96 = vmatpush1.msra.mxu0 0.0
  %97 = vmatprep.subr.mxu0 0.0
  %98 = vmatpush1.msra.mxu0 0.0
  %99 = vmatprep.subr.mxu0 0.0
  %100 = vmatpush1.msra.mxu0 0.0
  %101 = vmatprep.subr.mxu0 0.0
  %102 = vmatpush1.msra.mxu0 0.0
  %103 = vmatprep.subr.mxu0 0.0
  %104 = vmatpush1.msra.mxu0 0.0
  %105 = vmatprep.subr.mxu0 0.0
  %106 = vmatpush1.msra.mxu0 0.0
  %107 = vmatprep.subr.mxu0 0.0
  %108 = vmatpush1.msra.mxu0 0.0
  %109 = vmatprep.subr.mxu0 0.0
  %110 = vmatpush1.msra.mxu0 0.0
  %111 = vmatprep.mubr.f32.mxu0 0.0
  %112 = vmatmul.mubr.f32.gmra.mrb[0].mxu0 %v41
  %v113 = vpop.f32.mrb[0].mxu0
  %v114 = vadd.f32 %v37, %v113
  %v115 = vpop.f32.mrb[0].mxu0
  %116 = vdwg.mxu0
  %v117 = vmax.f32 %v114, 0.0
  %v118 = vld [vmem:[%s3] sm:$0xff]
  %v119 = vld [vmem:[%s3 + $0x8] sm:$0xff]
  %v120 = vld [vmem:[%s3 + $0x10] sm:$0xff]
  %v121 = vld [vmem:[%s3 + $0x18] sm:$0xff]
  %v122 = vld [vmem:[%s3 + $0x20] sm:$0xff]
  %v123 = vld [vmem:[%s3 + $0x28] sm:$0xff]
  %v124 = vld [vmem:[%s3 + $0x30] sm:$0xff]
  %v125 = vld [vmem:[%s3 + $0x38] sm:$0xff]
  %v126 = vld [vmem:[%s4] sm:$0x1]
  %v128 = vlaneseq
  %v129 = vshrl.u32 %v128, 7
  %v130 = vsub.s32 0, %v129
  %v131 = vrot.slane %v126, %v130
  %vm133 = vcmask 523264
  %v135 = vsel %vm133, %v117, 0
  %137 = vmatprep.subr.mxu0 0.0
  %138 = vmatpush1.msra.mxu0 %v118
  %139 = vmatprep.subr.mxu0 0.0
  %140 = vmatpush1.msra.mxu0 %v119
  %141 = vmatprep.subr.mxu0 0.0
  %142 = vmatpush1.msra.mxu0 %v120
  %143 = vmatprep.subr.mxu0 0.0
  %144 = vmatpush1.msra.mxu0 %v121
  %145 = vmatprep.subr.mxu0 0.0
  %146 = vmatpush1.msra.mxu0 %v122
  %147 = vmatprep.subr.mxu0 0.0
  %148 = vmatpush1.msra.mxu0 %v123
  %149 = vmatprep.subr.mxu0 0.0
  %150 = vmatpush1.msra.mxu0 %v124
  %151 = vmatprep.subr.mxu0 0.0
  %152 = vmatpush1.msra.mxu0 %v125
  %153 = vmatprep.subr.mxu0 0.0
  %154 = vmatpush1.msra.mxu0 0.0
  %155 = vmatprep.subr.mxu0 0.0
  %156 = vmatpush1.msra.mxu0 0.0
  %157 = vmatprep.subr.mxu0 0.0
  %158 = vmatpush1.msra.mxu0 0.0
  %159 = vmatprep.subr.mxu0 0.0
  %160 = vmatpush1.msra.mxu0 0.0
  %161 = vmatprep.subr.mxu0 0.0
  %162 = vmatpush1.msra.mxu0 0.0
  %163 = vmatprep.subr.mxu0 0.0
  %164 = vmatpush1.msra.mxu0 0.0
  %165 = vmatprep.subr.mxu0 0.0
  %166 = vmatpush1.msra.mxu0 0.0
  %167 = vmatprep.subr.mxu0 0.0
  %168 = vmatpush1.msra.mxu0 0.0
  %169 = vmatprep.subr.mxu0 0.0
  %170 = vmatpush1.msra.mxu0 0.0
  %171 = vmatprep.subr.mxu0 0.0
  %172 = vmatpush1.msra.mxu0 0.0
  %173 = vmatprep.subr.mxu0 0.0
  %174 = vmatpush1.msra.mxu0 0.0
  %175 = vmatprep.subr.mxu0 0.0
  %176 = vmatpush1.msra.mxu0 0.0
  %177 = vmatprep.subr.mxu0 0.0
  %178 = vmatpush1.msra.mxu0 0.0
  %179 = vmatprep.subr.mxu0 0.0
  %180 = vmatpush1.msra.mxu0 0.0
  %181 = vmatprep.subr.mxu0 0.0
  %182 = vmatpush1.msra.mxu0 0.0
  %183 = vmatprep.subr.mxu0 0.0
  %184 = vmatpush1.msra.mxu0 0.0
  %185 = vmatprep.subr.mxu0 0.0
  %186 = vmatpush1.msra.mxu0 0.0
  %187 = vmatprep.subr.mxu0 0.0
  %188 = vmatpush1.msra.mxu0 0.0
  %189 = vmatprep.subr.mxu0 0.0
  %190 = vmatpush1.msra.mxu0 0.0
  %191 = vmatprep.subr.mxu0 0.0
  %192 = vmatpush1.msra.mxu0 0.0
  %193 = vmatprep.subr.mxu0 0.0
  %194 = vmatpush1.msra.mxu0 0.0
  %195 = vmatprep.subr.mxu0 0.0
  %196 = vmatpush1.msra.mxu0 0.0
  %197 = vmatprep.subr.mxu0 0.0
  %198 = vmatpush1.msra.mxu0 0.0
  %199 = vmatprep.subr.mxu0 0.0
  %200 = vmatpush1.msra.mxu0 0.0
  %201 = vmatprep.mubr.f32.mxu0 0.0
  %202 = vmatmul.mubr.f32.gmra.mrb[0].mxu0 %v135
  %v203 = vpop.f32.mrb[0].mxu0
  %v204 = vadd.f32 %v131, %v203
  %v205 = vpop.f32.mrb[0].mxu0
  %206 = vdwg.mxu0
  %v207 = vmax.f32 %v204, 0.0
  %v208 = vld [vmem:[%s5] sm:$0xff]
  %v209 = vld [vmem:[%s5 + $0x8] sm:$0xff]
  %v210 = vld [vmem:[%s6] sm:$0x1]
  %v212 = vlaneseq
  %v213 = vshrl.u32 %v212, 7
  %v214 = vsub.s32 0, %v213
  %v215 = vrot.slane %v210, %v214
  %vm217 = vcmask 130048
  %v219 = vsel %vm217, %v207, 0
  %221 = vmatprep.subr.mxu0 0.0
  %222 = vmatpush1.msra.mxu0 %v208
  %223 = vmatprep.subr.mxu0 0.0
  %224 = vmatpush1.msra.mxu0 %v209
  %225 = vmatprep.subr.mxu0 0.0
  %226 = vmatpush1.msra.mxu0 0.0
  %227 = vmatprep.subr.mxu0 0.0
  %228 = vmatpush1.msra.mxu0 0.0
  %229 = vmatprep.subr.mxu0 0.0
  %230 = vmatpush1.msra.mxu0 0.0
  %231 = vmatprep.subr.mxu0 0.0
  %232 = vmatpush1.msra.mxu0 0.0
  %233 = vmatprep.subr.mxu0 0.0
  %234 = vmatpush1.msra.mxu0 0.0
  %235 = vmatprep.subr.mxu0 0.0
  %236 = vmatpush1.msra.mxu0 0.0
  %237 = vmatprep.subr.mxu0 0.0
  %238 = vmatpush1.msra.mxu0 0.0
  %239 = vmatprep.subr.mxu0 0.0
  %240 = vmatpush1.msra.mxu0 0.0
  %241 = vmatprep.subr.mxu0 0.0
  %242 = vmatpush1.msra.mxu0 0.0
  %243 = vmatprep.subr.mxu0 0.0
  %244 = vmatpush1.msra.mxu0 0.0
  %245 = vmatprep.subr.mxu0 0.0
  %246 = vmatpush1.msra.mxu0 0.0
  %247 = vmatprep.subr.mxu0 0.0
  %248 = vmatpush1.msra.mxu0 0.0
  %249 = vmatprep.subr.mxu0 0.0
  %250 = vmatpush1.msra.mxu0 0.0
  %251 = vmatprep.subr.mxu0 0.0
  %252 = vmatpush1.msra.mxu0 0.0
  %253 = vmatprep.subr.mxu0 0.0
  %254 = vmatpush1.msra.mxu0 0.0
  %255 = vmatprep.subr.mxu0 0.0
  %256 = vmatpush1.msra.mxu0 0.0
  %257 = vmatprep.subr.mxu0 0.0
  %258 = vmatpush1.msra.mxu0 0.0
  %259 = vmatprep.subr.mxu0 0.0
  %260 = vmatpush1.msra.mxu0 0.0
  %261 = vmatprep.subr.mxu0 0.0
  %262 = vmatpush1.msra.mxu0 0.0
  %263 = vmatprep.subr.mxu0 0.0
  %264 = vmatpush1.msra.mxu0 0.0
  %265 = vmatprep.subr.mxu0 0.0
  %266 = vmatpush1.msra.mxu0 0.0
  %267 = vmatprep.subr.mxu0 0.0
  %268 = vmatpush1.msra.mxu0 0.0
  %269 = vmatprep.subr.mxu0 0.0
  %270 = vmatpush1.msra.mxu0 0.0
  %271 = vmatprep.subr.mxu0 0.0
  %272 = vmatpush1.msra.mxu0 0.0
  %273 = vmatprep.subr.mxu0 0.0
  %274 = vmatpush1.msra.mxu0 0.0
  %275 = vmatprep.subr.mxu0 0.0
  %276 = vmatpush1.msra.mxu0 0.0
  %277 = vmatprep.subr.mxu0 0.0
  %278 = vmatpush1.msra.mxu0 0.0
  %279 = vmatprep.subr.mxu0 0.0
  %280 = vmatpush1.msra.mxu0 0.0
  %281 = vmatprep.subr.mxu0 0.0
  %282 = vmatpush1.msra.mxu0 0.0
  %283 = vmatprep.subr.mxu0 0.0
  %284 = vmatpush1.msra.mxu0 0.0
  %285 = vmatprep.mubr.f32.mxu0 0.0
  %286 = vmatmul.mubr.f32.gmra.mrb[0].mxu0 %v219
  %v287 = vpop.f32.mrb[0].mxu0
  %v288 = vadd.f32 %v215, %v287
  %v289 = vpop.f32.mrb[0].mxu0
  %290 = vdwg.mxu0
  %vm291 = vcmask 31744
  %v292 = vsel %vm291, %v288, 0.0
  %293 = vadd.xlane.f32.xlu0 %v292
  %v294 = vpop.xlane.xlu0 %293
  %v295 = vrcp.pop 4.0
  %v296 = vmul.f32 %v294, %v295
  %298 = vset.pattern.permute.xlu0 4
  %299 = vperm.xlu0 %298, %v288
  %v300 = vpop.permute.xlu0 %299
  %v302 = vadd.f32 %v300, %v288
  %v303 = vsub.f32 %v302, %v296
  %304 = vst.msk [vmem:[%s7] sm:$0xff] %vm291, %v303
  // Predicated region
  $region30: #{tpu_custom_call.1} parent=0 // pred_check
    _
  $region31: #{tpu_custom_call.1} parent=0 // pred_check_branch
    %306 = sbr.rel (0) target = $region33
  $region32: #{tpu_custom_call.1} parent=0 // pred_region
    _
  $region33: #{tpu_custom_call.1} parent=0 // pred_fallthru
    _
  // Predicated region
  $region34: #{tpu_custom_call.1} parent=0 // pred_check
    _
  $region35: #{tpu_custom_call.1} parent=0 // pred_check_branch
    %308 = sbr.rel (0) target = $region37
  $region36: #{tpu_custom_call.1} parent=0 // pred_region
    _
  $region37: #{tpu_custom_call.1} parent=0 // pred_fallthru
    _

</llo_original>
